<compile_context>
chip_gen: v5e
topology: v5e:2x2
jax: 0.10.0
libtpu: 0.0.40
codegen_flags: <defaults>
</compile_context>

<pallas_src>
import warnings

import jax
import jax.numpy as jnp
from jax.experimental import pallas as pl
from jax.experimental.pallas import tpu as pltpu  # noqa: F401  (no TPU-specific ops needed for an identity)


def _identity_kernel(pre_in_ref, post_in_ref, pre_out_ref, post_out_ref):
    # Outputs alias the inputs (input_output_aliases={0: 0, 1: 1}), so the
    # output buffers already hold the correct bytes.  No DMA, no VMEM, no
    # vld/vst, no MXU/VPU work — the cheapest possible kernel body is no body.
    # (Do NOT use pltpu.touch here: it has no state-discharge rule and breaks
    # interpret-mode execution; it is also unnecessary because the outputs are
    # consumed by the caller, so there is no DCE risk.)
    del pre_in_ref, post_in_ref, pre_out_ref, post_out_ref


def identity_pred(pre_embed, post_embed):
    """IdentitiyPred.forward — recommended implementation.

    A plain return is literally free on v5e/v6e/v7x and lets XLA fuse,
    re-layout, and elide buffers across this point in the surrounding graph.
    """
    return (pre_embed, post_embed)


def identity_pred_pallas(pre_embed, post_embed):
    """IdentitiyPred.forward as an explicit (zero-work) Pallas kernel.

    Gridless, operands stay in HBM (`pl.ANY`), outputs alias inputs.  For the
    aliasing to be real (zero HBM traffic) the inputs must be donated — use
    `identity_pred_pallas_donated` — otherwise XLA inserts a defensive copy
    (still numerically correct).
    """
    out_shapes = (
        jax.ShapeDtypeStruct(pre_embed.shape, pre_embed.dtype),
        jax.ShapeDtypeStruct(post_embed.shape, post_embed.dtype),
    )
    return pl.pallas_call(
        _identity_kernel,
        out_shape=out_shapes,
        # No BlockSpec tiling / auto-pipelined DMA: everything stays in place.
        in_specs=[
            pl.BlockSpec(memory_space=pl.ANY),
            pl.BlockSpec(memory_space=pl.ANY),
        ],
        out_specs=(
            pl.BlockSpec(memory_space=pl.ANY),
            pl.BlockSpec(memory_space=pl.ANY),
        ),
        # input i -> output i: the output buffers are the input buffers.
        input_output_aliases={0: 0, 1: 1},
    )(pre_embed, post_embed)


# Donated entry point: with donation the input buffers ARE the output buffers
# (no defensive XLA copy), i.e. true zero HBM traffic at Enformer scale.
# NOTE: after calling this, the donated input arrays are invalidated — use
# only the returned handles.
identity_pred_pallas_donated = jax.jit(identity_pred_pallas, donate_argnums=(0, 1))


if __name__ == "__main__":
    key = jax.random.PRNGKey(0)
    k1, k2 = jax.random.split(key)

    # Small shapes consistent with the forward: two embedding tensors
    # (batch=2, seq=8, hidden=32).  The module has no parameters.
    pre_embed = jax.random.normal(k1, (2, 8, 32), dtype=jnp.float32)
    post_embed = jax.random.normal(k2, (2, 8, 32), dtype=jnp.float32)

    # Host-side reference copies taken BEFORE donation (inputs are invalidated
    # by the donated call below).
    pre_host = jax.device_get(pre_embed)
    post_host = jax.device_get(post_embed)

    # 1) Recommended (kernel-free) path — exact identity, zero cost.
    pre_plain, post_plain = identity_pred(pre_embed, post_embed)
    assert bool(jnp.array_equal(pre_plain, pre_host))
    assert bool(jnp.array_equal(post_plain, post_host))

    # 2) Pallas path, run once with explicit buffer donation so the
    #    input/output aliasing is real.  (Suppress the benign "donation not
    #    usable" warning some backends emit; correctness is unaffected.)
    with warnings.catch_warnings():
        warnings.simplefilter("ignore")
        pre_out, post_out = identity_pred_pallas_donated(pre_embed, post_embed)
        jax.block_until_ready((pre_out, post_out))
    # pre_embed / post_embed were donated — only pre_out/post_out (and the
    # host copies) are valid from here on.

    assert pre_out.shape == pre_host.shape and pre_out.dtype == pre_host.dtype
    assert post_out.shape == post_host.shape and post_out.dtype == post_host.dtype
    assert bool(jnp.array_equal(pre_out, jnp.asarray(pre_host)))
    assert bool(jnp.array_equal(post_out, jnp.asarray(post_host)))

    print("KERNEL_OK")
</pallas_src>

<mosaic_0001>
module attributes {stable_mosaic.version = 11 : i64} {
  func.func @_identity_kernel(%arg0: memref<2x8x32xf32, #tpu.memory_space<any>>, %arg1: memref<2x8x32xf32, #tpu.memory_space<any>>, %arg2: memref<2x8x32xf32, #tpu.memory_space<any>>, %arg3: memref<2x8x32xf32, #tpu.memory_space<any>>) attributes {dimension_semantics = [], scalar_prefetch = 0 : i64, scratch_operands = 0 : i64, tpu.core_type = #tpu.core_type<tc>} {
    return
  }
}

</mosaic_0001>

<llo_original>
// kernel: identity_pred_pallas.1
$region0: #{identity_pred_pallas.1}
  #allocation0 [shape = 'u32[]', space=smem, size = 0x4, offset = 0x4, fixed_abs, tag = 'smem constant byte address 0x4 - core index']
  #allocation1 [shape = 'u32[72,128]{1,0:T(1,128)}', space=vmem, size = 0x9000, scoped, tag = 'internal scratch']
  %s0 = inlined_call_operand.hbm [shape: f32[2,8,32], index: 0, kind: input, shape index: {}, may-alias: {0,2}]
  %s1 = inlined_call_operand.hbm [shape: f32[2,8,32], index: 1, kind: input, shape index: {}, may-alias: {1,3}]
  %s2 = inlined_call_operand.hbm [shape: f32[2,8,32], index: 2, kind: output, shape index: {0}, may-alias: {0,2}]
  %s3 = inlined_call_operand.hbm [shape: f32[2,8,32], index: 3, kind: output, shape index: {1}, may-alias: {1,3}]
  %4 = xla_tuple %s2, %s3
  %s5 = sld [smem:[#allocation0]]
  $region2: #{identity_pred_pallas.1} parent=0
    _
  %s7 = ssub.s32 1, %s5
  %s8 = scalar_select 0, %s7, %s5

</llo_original>
